<compile_context>
chip_gen: v7x
topology: tpu7x:2x2x1
jax: 0.10.0
libtpu: 0.0.40
codegen_flags: <defaults>
</compile_context>

<pallas_src>
import jax
import jax.numpy as jnp
from jax.experimental import pallas as pl
from jax.experimental.pallas import tpu as pltpu


def _fusion_kernel(text_ref, graph_ref, wt_ref, wg_ref, b_ref, out_ref):
    # Streams stay in their native dtype in VMEM; arithmetic runs in f32
    # (matches the torch reference; v5e has no bf16 VALU anyway).
    t = text_ref[...].astype(jnp.float32)          # (TB, D)
    g = graph_ref[...].astype(jnp.float32)         # (TB, D)
    wt = wt_ref[...]                               # (1, D) f32, resident
    wg = wg_ref[...]                               # (1, D) f32, resident

    # Linear(2D -> 1) on the (never materialized) concat: VPU multiply +
    # XLU lane reduction instead of two one-column MXU matvecs.
    logits = jnp.sum(t * wt + g * wg, axis=-1, keepdims=True) + b_ref[0]  # (TB,1)
    w = jax.nn.sigmoid(logits)                     # gating weight, (TB, 1)

    # fused = w * text + (1 - w) * graph, broadcast over the feature dim.
    out_ref[...] = (w * t + (1.0 - w) * g).astype(out_ref.dtype)


def _choose_block_rows(batch, feat, itemsize):
    # Per row of a tile we hold: 3 streams (text, graph, out) x 2 pipeline
    # buffers in the native dtype, plus ~4 f32 compute temporaries.  Keep
    # the total comfortably under v7x's 64 MiB per-TC VMEM.
    budget = 40 * 1024 * 1024
    per_row = 6 * feat * itemsize + 4 * feat * 4
    tb = budget // per_row
    tb = int(max(8, min(2048, tb)))
    if batch <= tb:
        return batch                 # single full-height block: always legal
    return max(8, (tb // 8) * 8)     # multiple of 8 sublanes; last tile ragged


def fusion_net(features_text, features_graph, fc_weight, fc_bias):
    """features_text/graph: (B, D) f32 or bf16. fc_weight: (1, 2D). fc_bias: (1,)."""
    B, D = features_text.shape
    assert features_graph.shape == (B, D)
    assert fc_weight.shape == (1, 2 * D)

    stream_dtype = features_text.dtype
    itemsize = jnp.dtype(stream_dtype).itemsize

    # Split the (1, 2D) torch Linear weight into its text / graph halves,
    # kept as (1, D) row vectors (no transpose, no MXU).
    w_text = fc_weight[:, :D].astype(jnp.float32)     # (1, D)
    w_graph = fc_weight[:, D:].astype(jnp.float32)    # (1, D)
    b = fc_bias.reshape(1).astype(jnp.float32)        # (1,) -> SMEM scalar

    TB = _choose_block_rows(B, D, itemsize)
    grid = (pl.cdiv(B, TB),)

    # 3 streams double-buffered in native dtype + f32 temporaries + weights.
    pipeline_bytes = 3 * 2 * TB * D * itemsize + 4 * TB * D * 4 + 2 * D * 4
    vmem_limit = int(min(60 * 1024 * 1024,
                         max(32 * 1024 * 1024, pipeline_bytes + (4 << 20))))

    cost = pl.CostEstimate(
        flops=7 * B * D,                    # gate (~4 B*D) + blend (~3 B*D)
        transcendentals=B,                  # one sigmoid per row
        bytes_accessed=3 * B * D * itemsize,
    )

    return pl.pallas_call(
        _fusion_kernel,
        out_shape=jax.ShapeDtypeStruct((B, D), stream_dtype),
        grid=grid,
        in_specs=[
            pl.BlockSpec((TB, D), lambda i: (i, 0)),            # text tile
            pl.BlockSpec((TB, D), lambda i: (i, 0)),            # graph tile
            pl.BlockSpec((1, D), lambda i: (0, 0)),             # w_text (resident)
            pl.BlockSpec((1, D), lambda i: (0, 0)),             # w_graph (resident)
            pl.BlockSpec(memory_space=pltpu.MemorySpace.SMEM),  # bias scalar
        ],
        out_specs=pl.BlockSpec((TB, D), lambda i: (i, 0)),
        compiler_params=pltpu.CompilerParams(
            dimension_semantics=("parallel",),   # megacore-shard the batch
            vmem_limit_bytes=vmem_limit,
        ),
        cost_estimate=cost,
    )(features_text, features_graph, w_text, w_graph, b)


def fusion_net_ref(features_text, features_graph, fc_weight, fc_bias):
    combined = jnp.concatenate([features_text, features_graph], axis=-1)
    w = jax.nn.sigmoid(combined @ fc_weight.T + fc_bias)   # (B, 1)
    return w * features_text + (1.0 - w) * features_graph


if __name__ == "__main__":
    key = jax.random.PRNGKey(0)
    k_t, k_g, k_w, k_b = jax.random.split(key, 4)

    B, D = 8, 32                      # small shapes; input_size = 2 * D = 64
    features_text = jax.random.normal(k_t, (B, D), dtype=jnp.float32)
    features_graph = jax.random.normal(k_g, (B, D), dtype=jnp.float32)

    # Deterministic "nn.Linear(input_size, 1)" parameters (synthetic init).
    bound = 1.0 / jnp.sqrt(2.0 * D)
    fc_weight = jax.random.uniform(k_w, (1, 2 * D), minval=-bound, maxval=bound,
                                   dtype=jnp.float32)
    fc_bias = jax.random.uniform(k_b, (1,), minval=-bound, maxval=bound,
                                 dtype=jnp.float32)

    out = fusion_net(features_text, features_graph, fc_weight, fc_bias)
    out = jax.block_until_ready(out)

    ref = fusion_net_ref(features_text, features_graph, fc_weight, fc_bias)
    assert out.shape == (B, D)
    assert jnp.allclose(out, ref, atol=1e-5, rtol=1e-5), "mismatch vs reference"

    print("KERNEL_OK")
</pallas_src>

<mosaic_0001>
module attributes {stable_mosaic.version = 11 : i64} {
  func.func @_fusion_kernel(%arg0: i32, %arg1: memref<8x32xf32, #tpu.memory_space<vmem>>, %arg2: memref<8x32xf32, #tpu.memory_space<vmem>>, %arg3: memref<1x32xf32, #tpu.memory_space<vmem>>, %arg4: memref<1x32xf32, #tpu.memory_space<vmem>>, %arg5: memref<1xf32, #tpu.memory_space<smem>>, %arg6: memref<8x32xf32, #tpu.memory_space<vmem>>) attributes {dimension_semantics = [#tpu.dimension_semantics<parallel>], iteration_bounds = array<i64: 1>, scalar_prefetch = 0 : i64, scratch_operands = 0 : i64, tpu.core_type = #tpu.core_type<tc>, window_params = [{transform_indices = @transform_0, window_bounds = array<i64: 8, 32>}, {transform_indices = @transform_1, window_bounds = array<i64: 8, 32>}, {pipeline_mode = #tpu.pipeline_mode<synchronous>, transform_indices = @transform_2, window_bounds = array<i64: 1, 32>}, {pipeline_mode = #tpu.pipeline_mode<synchronous>, transform_indices = @transform_3, window_bounds = array<i64: 1, 32>}, {transform_indices = @transform_4, window_bounds = array<i64: 1>}, {transform_indices = @transform_5, window_bounds = array<i64: 8, 32>}]} {
    %c0 = arith.constant 0 : index
    %c0_0 = arith.constant 0 : index
    %0 = vector.load %arg1[%c0, %c0_0] : memref<8x32xf32, #tpu.memory_space<vmem>>, vector<8x32xf32>
    %c0_1 = arith.constant 0 : index
    %c0_2 = arith.constant 0 : index
    %1 = vector.load %arg2[%c0_1, %c0_2] : memref<8x32xf32, #tpu.memory_space<vmem>>, vector<8x32xf32>
    %c0_3 = arith.constant 0 : index
    %c0_4 = arith.constant 0 : index
    %2 = vector.load %arg3[%c0_3, %c0_4] : memref<1x32xf32, #tpu.memory_space<vmem>>, vector<1x32xf32>
    %c0_5 = arith.constant 0 : index
    %c0_6 = arith.constant 0 : index
    %3 = vector.load %arg4[%c0_5, %c0_6] : memref<1x32xf32, #tpu.memory_space<vmem>>, vector<1x32xf32>
    %4 = vector.broadcast %2 : vector<1x32xf32> to vector<8x32xf32>
    %5 = arith.mulf %0, %4 : vector<8x32xf32>
    %6 = vector.broadcast %3 : vector<1x32xf32> to vector<8x32xf32>
    %7 = arith.mulf %1, %6 : vector<8x32xf32>
    %8 = arith.addf %5, %7 : vector<8x32xf32>
    %cst = arith.constant dense<0.000000e+00> : vector<8xf32>
    %9 = vector.multi_reduction <add>, %8, %cst [1] : vector<8x32xf32> to vector<8xf32>
    %10 = vector.shape_cast %9 : vector<8xf32> to vector<8x1xf32>
    %c0_7 = arith.constant 0 : index
    %11 = memref.load %arg5[%c0_7] : memref<1xf32, #tpu.memory_space<smem>>
    %12 = vector.broadcast %11 : f32 to vector<8x1xf32>
    %13 = arith.addf %10, %12 : vector<8x1xf32>
    %14 = arith.negf %13 : vector<8x1xf32>
    %15 = math.exp %14 : vector<8x1xf32>
    %cst_8 = arith.constant 1.000000e+00 : f32
    %16 = vector.broadcast %cst_8 : f32 to vector<8x1xf32>
    %17 = arith.addf %16, %15 : vector<8x1xf32>
    %18 = arith.divf %16, %17 : vector<8x1xf32>
    %19 = vector.broadcast %18 : vector<8x1xf32> to vector<8x32xf32>
    %20 = arith.mulf %19, %0 : vector<8x32xf32>
    %cst_9 = arith.constant 1.000000e+00 : f32
    %21 = vector.broadcast %cst_9 : f32 to vector<8x1xf32>
    %22 = arith.subf %21, %18 : vector<8x1xf32>
    %23 = vector.broadcast %22 : vector<8x1xf32> to vector<8x32xf32>
    %24 = arith.mulf %23, %1 : vector<8x32xf32>
    %25 = arith.addf %20, %24 : vector<8x32xf32>
    %c0_10 = arith.constant 0 : index
    %c0_11 = arith.constant 0 : index
    %26 = vector.load %arg6[%c0_10, %c0_11] : memref<8x32xf32, #tpu.memory_space<vmem>>, vector<8x32xf32>
    tpu.vector_store %arg6[%c0_10, %c0_11], %25 {strides = array<i32>} : memref<8x32xf32, #tpu.memory_space<vmem>>, vector<8x32xf32>,
    return
  }
  func.func @transform_0(%arg0: i32) -> (i32, i32) {
    %c0_i32 = arith.constant 0 : i32
    %c0_i32_0 = arith.constant 0 : i32
    return %arg0, %c0_i32 : i32, i32
  }
  func.func @transform_1(%arg0: i32) -> (i32, i32) {
    %c0_i32 = arith.constant 0 : i32
    %c0_i32_0 = arith.constant 0 : i32
    return %arg0, %c0_i32 : i32, i32
  }
  func.func @transform_2(%arg0: i32) -> (i32, i32) {
    %c0_i32 = arith.constant 0 : i32
    %c0_i32_0 = arith.constant 0 : i32
    %c0_i32_1 = arith.constant 0 : i32
    return %c0_i32, %c0_i32_0 : i32, i32
  }
  func.func @transform_3(%arg0: i32) -> (i32, i32) {
    %c0_i32 = arith.constant 0 : i32
    %c0_i32_0 = arith.constant 0 : i32
    %c0_i32_1 = arith.constant 0 : i32
    return %c0_i32, %c0_i32_0 : i32, i32
  }
  func.func @transform_4(%arg0: i32) -> i32 {
    %c0_i32 = arith.constant 0 : i32
    %c0_i32_0 = arith.constant 0 : i32
    return %c0_i32 : i32
  }
  func.func @transform_5(%arg0: i32) -> (i32, i32) {
    %c0_i32 = arith.constant 0 : i32
    %c0_i32_0 = arith.constant 0 : i32
    return %arg0, %c0_i32 : i32, i32
  }
}

</mosaic_0001>

<llo_original>
// kernel: tpu_custom_call.1
$region0: #{tpu_custom_call.1}
  #allocation0 [shape = 'u32[]', space=smem, size = 0x4, offset = 0x4, fixed_abs, tag = 'smem constant byte address 0x4 - core index']
  #allocation1 [shape = 'u32[144,128]{1,0:T(1,128)}', space=vmem, size = 0x12000, scoped, tag = 'internal scratch']
  #allocation2 [shape = 'f32[1]{0:T(128)S(6)}', space=smem, size = 0x200, scoped, tag = 'scoped memory for tpu_custom_call.1']
  %s0 = inlined_call_operand.hbm [shape: f32[8,32], index: 0, kind: input, shape index: {}]
  %s1 = inlined_call_operand.hbm [shape: f32[8,32], index: 1, kind: input, shape index: {}]
  %s2 = inlined_call_operand.vmem [shape: f32[1,32], index: 2, kind: input, shape index: {}]
  %s3 = inlined_call_operand.vmem [shape: f32[1,32], index: 3, kind: input, shape index: {}]
  %s4 = inlined_call_operand.<no memory space> [shape: f32[1], index: 4, kind: input, shape index: {}]
  %s5 = inlined_call_operand.hbm [shape: f32[8,32], index: 5, kind: output, shape index: {}]
  %s6 = sld [smem:[#allocation0]]
  $region38: #{tpu_custom_call.1} parent=0
    _
  %s8 = ssub.s32 1, %s6
  %s9 = scalar_select 0, %s8, %s6
  %10 = sst [smem:[#allocation2]] %s4
  $region1: #{tpu_custom_call.1} parent=0
    #allocation3 [shape = 'u8[4096]{0}', space=vmem, size = 0x1000, scoped, tag = 'input window, operand 0, single buffered']
    #allocation4 [shape = 's32[1]{0}', space=sflag, size = 0x4, scoped, tag = 'scoped memory for tpu_custom_call.1']
    #allocation5 [shape = 's32[1]{0}', space=sflag, size = 0x4, scoped, tag = 'scoped memory for tpu_custom_call.1']
    #allocation6 [shape = 'u8[4096]{0}', space=vmem, size = 0x1000, scoped, tag = 'input window, operand 1, single buffered']
    #allocation7 [shape = 's32[1]{0}', space=sflag, size = 0x4, scoped, tag = 'scoped memory for tpu_custom_call.1']
    #allocation8 [shape = 'u8[4096]{0}', space=vmem, size = 0x1000, scoped, tag = 'output window, operand 0, single buffered']
    %11 = vsyncpa [#allocation4], 0
    %12 = vsyncpa [#allocation7], 0
    %13 = vsyncpa [#allocation5], 0
    // Predicated region
    $region2: #{tpu_custom_call.1} parent=1 // pred_check
      _
    $region3: #{tpu_custom_call.1} parent=1 // pred_check_branch
      %15 = sbr.rel (0) target = $region5
    $region4: #{tpu_custom_call.1} parent=1 // pred_region
      %s17 = ssub.s32 128, 128
      %18 = vsyncadd [#allocation4], %s17
      %s20 = sshll.u32 [#allocation3], 4
      %s21 = int_to_ptr.vmem [resolvable:$true] %s20
      %23 = dma.hbm_to_vmem [thread:$0]  %s0, 128, %s21, [#allocation4]
    $region5: #{tpu_custom_call.1} parent=1 // pred_fallthru
      _
    // Predicated region
    $region6: #{tpu_custom_call.1} parent=1 // pred_check
      _
    $region7: #{tpu_custom_call.1} parent=1 // pred_check_branch
      %25 = sbr.rel (0) target = $region9
    $region8: #{tpu_custom_call.1} parent=1 // pred_region
      %s27 = ssub.s32 128, 128
      %28 = vsyncadd [#allocation7], %s27
      %s30 = sshll.u32 [#allocation6], 4
      %s31 = int_to_ptr.vmem [resolvable:$true] %s30
      %33 = dma.hbm_to_vmem [thread:$0]  %s1, 128, %s31, [#allocation7]
    $region9: #{tpu_custom_call.1} parent=1 // pred_fallthru
      _
    // Predicated region
    $region10: #{tpu_custom_call.1} parent=1 // pred_check
      _
    $region11: #{tpu_custom_call.1} parent=1 // pred_check_branch
      %35 = sbr.rel (0) target = $region13
    $region12: #{tpu_custom_call.1} parent=1 // pred_region
      _
    $region13: #{tpu_custom_call.1} parent=1 // pred_fallthru
      _
    // Predicated region
    $region14: #{tpu_custom_call.1} parent=1 // pred_check
      _
    $region15: #{tpu_custom_call.1} parent=1 // pred_check_branch
      %37 = sbr.rel (0) target = $region17
    $region16: #{tpu_custom_call.1} parent=1 // pred_region
      _
    $region17: #{tpu_custom_call.1} parent=1 // pred_fallthru
      _
    // Predicated region
    $region18: #{tpu_custom_call.1} parent=1 // pred_check
      _
    $region19: #{tpu_custom_call.1} parent=1 // pred_check_branch
      %39 = sbr.rel (0) target = $region21
    $region20: #{tpu_custom_call.1} parent=1 // pred_region
      _
    $region21: #{tpu_custom_call.1} parent=1 // pred_fallthru
      _
    // Predicated region
    $region22: #{tpu_custom_call.1} parent=1 // pred_check
      _
    $region23: #{tpu_custom_call.1} parent=1 // pred_check_branch
      %41 = sbr.rel (0) target = $region25
    $region24: #{tpu_custom_call.1} parent=1 // pred_region
      %42 = dma.done [#allocation4], 128
    $region25: #{tpu_custom_call.1} parent=1 // pred_fallthru
      _
    // Predicated region
    $region26: #{tpu_custom_call.1} parent=1 // pred_check
      _
    $region27: #{tpu_custom_call.1} parent=1 // pred_check_branch
      %44 = sbr.rel (0) target = $region29
    $region28: #{tpu_custom_call.1} parent=1 // pred_region
      %45 = dma.done [#allocation7], 128
    $region29: #{tpu_custom_call.1} parent=1 // pred_fallthru
      _
    %v46 = vld [vmem:[#allocation3] sm:$0xff]
    %v47 = vld [vmem:[#allocation6] sm:$0xff]
    %v48 = vld [vmem:[%s2] sm:$0x1]
    %v49 = vld [vmem:[%s3] sm:$0x1]
    %v51 = vlaneseq
    %v52 = vshrl.u32 %v51, 7
    %v53 = vsub.s32 0, %v52
    %v54 = vrot.slane %v48, %v53
    %v56 = vmul.f32 %v46, %v54
    %v58 = vlaneseq
    %v59 = vshrl.u32 %v58, 7
    %v60 = vsub.s32 0, %v59
    %v61 = vrot.slane %v49, %v60
    %v63 = vmul.f32 %v47, %v61
    %v64 = vadd.f32 %v56, %v63
    %vm65 = vcmask 261120
    %v66 = vsel %vm65, %v64, 0.0
    %67 = vadd.xlane.f32.xlu0 %v66
    %v68 = vpop.xlane.xlu0 %67
    %s69 = sld [smem:[#allocation2]]
    %v70 = vstv %s69
    %v71 = vadd.f32 %v68, %v70
    %v72 = vxor.u32 %v71, 2147483648
    %v73 = vmul.f32 %v72, 1.442695
    %v74 = vpow.pop %v73
    %v75 = vadd.f32 %v74, 1.0
    %v76 = vrcp.pop %v75
    %v77 = vmul.f32 1.0, %v76
    %v78 = vmul.f32 %v77, %v46
    %v79 = vsub.f32 1.0, %v77
    %v80 = vmul.f32 %v79, %v47
    %v81 = vadd.f32 %v78, %v80
    %82 = vst.msk [vmem:[#allocation8] sm:$0xff] %vm65, %v81
    // Predicated region
    $region30: #{tpu_custom_call.1} parent=1 // pred_check
      _
    $region31: #{tpu_custom_call.1} parent=1 // pred_check_branch
      %84 = sbr.rel (0) target = $region33
    $region32: #{tpu_custom_call.1} parent=1 // pred_region
      %s86 = ssub.s32 128, 128
      %87 = vsyncadd [#allocation5], %s86
      %s89 = sshll.u32 [#allocation8], 4
      %s90 = int_to_ptr.vmem [resolvable:$true] %s89
      %92 = dma.vmem_to_hbm [thread:$0]  %s90, 128, %s5, [#allocation5]
    $region33: #{tpu_custom_call.1} parent=1 // pred_fallthru
      _
    // Predicated region
    $region34: #{tpu_custom_call.1} parent=1 // pred_check
      _
    $region35: #{tpu_custom_call.1} parent=1 // pred_check_branch
      %94 = sbr.rel (0) target = $region37
    $region36: #{tpu_custom_call.1} parent=1 // pred_region
      %95 = dma.done [#allocation5], 128
    $region37: #{tpu_custom_call.1} parent=1 // pred_fallthru
      _
    %96 = vsyncpa [#allocation4], 1
    %97 = vsyncpa [#allocation7], 1
    %98 = vsyncpa [#allocation5], 1

</llo_original>
